<compile_context>
chip_gen: v6e
topology: v6e:2x2x1
jax: 0.10.0
libtpu: 0.0.40
codegen_flags: <defaults>
</compile_context>

<pallas_src>
import jax
import jax.numpy as jnp
from jax import lax
from jax.experimental import pallas as pl
from jax.experimental.pallas import tpu as pltpu

BN_EPS = 1e-5


# -----------------------------------------------------------------------------
# Kernel
# -----------------------------------------------------------------------------
def linear_block_kernel(x_ref, w_ref, gamma_ref, beta_ref, o_ref, acc_ref):
    """Grid = (out_f/TN, in_f/TK).  acc_ref: [B, TN] f32 scratch."""
    k = pl.program_id(1)

    @pl.when(k == 0)
    def _init():
        acc_ref[...] = jnp.zeros_like(acc_ref)

    # ---- Linear (bias omitted: cancelled exactly by train-mode BN) ----
    # x tile: [B, TK]; W tile: [TN, TK] (PyTorch layout) -> contract last dims
    # of both on the MXU (no transpose), accumulate in f32.
    acc_ref[...] += lax.dot_general(
        x_ref[...], w_ref[...],
        dimension_numbers=(((1,), (1,)), ((), ())),
        preferred_element_type=jnp.float32,
    )

    # ---- BatchNorm1d (training mode, biased variance) + ReLU epilogue ----
    @pl.when(k == pl.num_programs(1) - 1)
    def _epilogue():
        y = acc_ref[...]                                   # [B, TN] f32
        inv_b = 1.0 / y.shape[0]
        # One-pass statistics (single read of y; no materialized centered temp).
        s1 = jnp.sum(y, axis=0, keepdims=True)             # (1, TN)
        s2 = jnp.sum(y * y, axis=0, keepdims=True)         # (1, TN)
        mean = s1 * inv_b
        var = jnp.maximum(s2 * inv_b - mean * mean, 0.0)   # clamp f32 cancellation
        scale = gamma_ref[...] * lax.rsqrt(var + BN_EPS)   # (1, TN)
        shift = beta_ref[...] - mean * scale               # (1, TN)
        o_ref[...] = jnp.maximum(y * scale + shift, 0.0).astype(o_ref.dtype)


# -----------------------------------------------------------------------------
# VMEM-aware tiling helpers
# -----------------------------------------------------------------------------
def _round_up(n, m):
    return ((n + m - 1) // m) * m


def _vmem_capacity_bytes():
    try:
        info = pltpu.get_tpu_info()
        cap = getattr(info, "vmem_capacity_bytes", None)
        if cap:
            return int(cap)
    except Exception:
        pass
    return 64 * 1024 * 1024  # conservative default (v7x per-TC VMEM)


def _choose_tiles(B, in_f, out_f_p, x_bytes, w_bytes, o_bytes, budget):
    """Pick (TN, TK) so the pipelined footprint fits the VMEM budget."""
    tn_cands = [t for t in (1024, 512, 256, 128) if out_f_p % t == 0] or [out_f_p]
    # Prefer whole in_f (no K loop, x single-buffered), else 128-multiple slices.
    tk_cands = [in_f] + [t for t in (2048, 1024, 512, 256, 128)
                         if in_f % t == 0 and t < in_f]

    def footprint(tn, tk):
        x_bufs = 1 if tk == in_f else 2               # invariant x -> single buffer
        return (x_bufs * B * tk * x_bytes             # x tile(s)
                + 2 * tn * tk * w_bytes               # W double-buffer
                + 2 * B * tn * o_bytes                # output double-buffer
                + B * tn * 4                          # f32 accumulator scratch
                + 2 * 2 * 8 * tn * 4)                 # gamma/beta tiles (padded)

    for tn in tn_cands:                               # largest TN first
        for tk in tk_cands:                           # largest TK first
            if footprint(tn, tk) <= budget:
                return tn, tk
    return tn_cands[-1], tk_cands[-1]                 # best effort


# -----------------------------------------------------------------------------
# Wrapper
# -----------------------------------------------------------------------------
def linear_block(x, w, b, gamma, beta, *, tn=None, tk=None):
    """Forward of LinearBlock (train-mode BatchNorm).

    x: [B, in_f]; w: [out_f, in_f] (PyTorch layout); b/gamma/beta: [out_f].
    `b` is accepted for signature parity but unused: with training-mode
    BatchNorm the linear bias cancels exactly in the forward output.

    Perf note: B feeds the MXU M dimension -- use B >= 128 (v5e) / 256
    (v6e, v7x) for compute-bound operation; tiny B is DMA/step-overhead bound.
    bf16 x/w are accepted (f32 MXU accumulation is kept).
    """
    del b  # mathematically cancelled by the BN mean subtraction (train mode)
    B, in_f = x.shape
    out_f = w.shape[0]

    # Pad out_features to a 128 multiple -> lane-dense (unmasked) stores and a
    # real multi-step feature grid. Padded columns produce exactly 0 output.
    out_f_p = _round_up(out_f, 128)
    if out_f_p != out_f:
        pad = out_f_p - out_f
        w = jnp.pad(w, ((0, pad), (0, 0)))
        gamma = jnp.pad(gamma, (0, pad))
        beta = jnp.pad(beta, (0, pad))

    cap = _vmem_capacity_bytes()
    vmem_limit = int(0.75 * cap)      # explicit scoped-VMEM limit
    budget = int(0.65 * cap)          # tiling budget (headroom under the limit)

    auto_tn, auto_tk = _choose_tiles(
        B, in_f, out_f_p,
        jnp.dtype(x.dtype).itemsize, jnp.dtype(w.dtype).itemsize,
        jnp.dtype(x.dtype).itemsize, budget)
    tn = tn or auto_tn
    tk = tk or auto_tk
    assert out_f_p % tn == 0, "padded out_features must be divisible by TN"
    assert in_f % tk == 0, "in_features must be divisible by TK"

    g2 = gamma.reshape(1, out_f_p).astype(jnp.float32)
    be2 = beta.reshape(1, out_f_p).astype(jnp.float32)

    grid = (out_f_p // tn, in_f // tk)

    def run(x_spec):
        return pl.pallas_call(
            linear_block_kernel,
            out_shape=jax.ShapeDtypeStruct((B, out_f_p), x.dtype),
            grid=grid,
            in_specs=[
                x_spec,
                # W strip [TN, TK] in PyTorch layout (no wrapper transpose).
                pl.BlockSpec((tn, tk), lambda j, k: (j, k)),
                pl.BlockSpec((1, tn), lambda j, k: (0, j)),
                pl.BlockSpec((1, tn), lambda j, k: (0, j)),
            ],
            out_specs=pl.BlockSpec((B, tn), lambda j, k: (0, j)),
            scratch_shapes=[pltpu.VMEM((B, tn), jnp.float32)],
            compiler_params=pltpu.CompilerParams(
                dimension_semantics=("parallel", "arbitrary"),
                vmem_limit_bytes=vmem_limit,
            ),
        )(x, w, g2, be2)

    if tk == in_f:
        # x block index is grid-invariant -> single-buffer it (halves x VMEM).
        try:
            out = run(pl.BlockSpec((B, tk), lambda j, k: (0, k),
                                   pipeline_mode=pl.Buffered(1)))
        except Exception:
            # Fallback for environments without Buffered(1) support.
            out = run(pl.BlockSpec((B, tk), lambda j, k: (0, k)))
    else:
        out = run(pl.BlockSpec((B, tk), lambda j, k: (0, k)))

    return out[:, :out_f] if out_f_p != out_f else out


def linear_block_ref(x, w, b, gamma, beta):
    """Pure-JAX reference mirroring PyTorch train-mode forward (bias included)."""
    y = x @ w.T + b
    mean = jnp.mean(y, axis=0, keepdims=True)
    var = jnp.mean((y - mean) ** 2, axis=0, keepdims=True)
    y_hat = (y - mean) / jnp.sqrt(var + BN_EPS)
    return jnp.maximum(y_hat * gamma + beta, 0.0)


# -----------------------------------------------------------------------------
# Self-test
# -----------------------------------------------------------------------------
if __name__ == "__main__":
    # Small shapes consistent with the module. NOTE: for real workloads batch
    # rows to >= 128 (v5e) / >= 256 (v6e, v7x) to fill the MXU M dimension;
    # B=8 here is a correctness check (launch/DMA-overhead dominated).
    B, in_features, out_features = 8, 256, 256

    key = jax.random.PRNGKey(0)
    kx, kw, kb = jax.random.split(key, 3)

    x = jax.random.normal(kx, (B, in_features), dtype=jnp.float32)
    # PyTorch nn.Linear default init: U(-1/sqrt(in), 1/sqrt(in))
    bound = 1.0 / (in_features ** 0.5)
    w = jax.random.uniform(kw, (out_features, in_features),
                           minval=-bound, maxval=bound, dtype=jnp.float32)
    b = jax.random.uniform(kb, (out_features,),
                           minval=-bound, maxval=bound, dtype=jnp.float32)
    # BatchNorm1d affine params at default init
    gamma = jnp.ones((out_features,), dtype=jnp.float32)
    beta = jnp.zeros((out_features,), dtype=jnp.float32)

    ref = linear_block_ref(x, w, b, gamma, beta)

    # Path 1: auto tiles (TK == in_f -> single K step, single-buffered x).
    out_auto = jax.block_until_ready(linear_block(x, w, b, gamma, beta))
    # Path 2: forced feature + K tiling (exercises accumulator + epilogue).
    out_tiled = jax.block_until_ready(
        linear_block(x, w, b, gamma, beta, tn=128, tk=128))

    for out in (out_auto, out_tiled):
        assert out.shape == (B, out_features)
        assert jnp.allclose(out, ref, atol=1e-4, rtol=1e-4)

    print("KERNEL_OK")
</pallas_src>

<mosaic_0001>
module attributes {stable_mosaic.version = 11 : i64} {
  func.func @linear_block_kernel(%arg0: i32, %arg1: i32, %arg2: memref<8x256xf32, #tpu.memory_space<vmem>>, %arg3: memref<256x256xf32, #tpu.memory_space<vmem>>, %arg4: memref<1x256xf32, #tpu.memory_space<vmem>>, %arg5: memref<1x256xf32, #tpu.memory_space<vmem>>, %arg6: memref<8x256xf32, #tpu.memory_space<vmem>>, %arg7: memref<8x256xf32, #tpu.memory_space<vmem>>) attributes {dimension_semantics = [#tpu.dimension_semantics<parallel>, #tpu.dimension_semantics<arbitrary>], iteration_bounds = array<i64: 1, 1>, scalar_prefetch = 0 : i64, scratch_operands = 1 : i64, tpu.core_type = #tpu.core_type<tc>, window_params = [{pipeline_mode = #tpu.pipeline_mode<synchronous>, transform_indices = @transform_0, window_bounds = array<i64: 8, 256>}, {transform_indices = @transform_1, window_bounds = array<i64: 256, 256>}, {transform_indices = @transform_2, window_bounds = array<i64: 1, 256>}, {transform_indices = @transform_3, window_bounds = array<i64: 1, 256>}, {transform_indices = @transform_4, window_bounds = array<i64: 8, 256>}]} {
    %c0_i32 = arith.constant 0 : i32
    %0 = arith.cmpi eq, %arg1, %c0_i32 : i32
    %1 = arith.extui %0 : i1 to i32
    %c0_i32_0 = arith.constant 0 : i32
    %2 = arith.cmpi ne, %1, %c0_i32_0 : i32
    scf.if %2 {
      %cst_10 = arith.constant 0.000000e+00 : f32
      %12 = vector.broadcast %cst_10 : f32 to vector<8x256xf32>
      %c0_11 = arith.constant 0 : index
      %c0_12 = arith.constant 0 : index
      %13 = vector.load %arg7[%c0_11, %c0_12] : memref<8x256xf32, #tpu.memory_space<vmem>>, vector<8x256xf32>
      tpu.vector_store %arg7[%c0_11, %c0_12], %12 {strides = array<i32>} : memref<8x256xf32, #tpu.memory_space<vmem>>, vector<8x256xf32>,
    } else {
    }
    %c0 = arith.constant 0 : index
    %c0_1 = arith.constant 0 : index
    %3 = vector.load %arg7[%c0, %c0_1] : memref<8x256xf32, #tpu.memory_space<vmem>>, vector<8x256xf32>
    %c0_2 = arith.constant 0 : index
    %c0_3 = arith.constant 0 : index
    %4 = vector.load %arg2[%c0_2, %c0_3] : memref<8x256xf32, #tpu.memory_space<vmem>>, vector<8x256xf32>
    %c0_4 = arith.constant 0 : index
    %c0_5 = arith.constant 0 : index
    %5 = vector.load %arg3[%c0_4, %c0_5] : memref<256x256xf32, #tpu.memory_space<vmem>>, vector<256x256xf32>
    %cst = arith.constant dense<0.000000e+00> : vector<8x256xf32>
    %6 = tpu.matmul %4, %5, %cst {dimension_numbers = #tpu.dot_dimension_numbers<[1], [1], [0], [0], [0, 0, 1, 0], [], []>} : vector<8x256xf32>, vector<256x256xf32>, vector<8x256xf32> -> vector<8x256xf32>
    %7 = arith.addf %3, %6 : vector<8x256xf32>
    %c0_6 = arith.constant 0 : index
    %c0_7 = arith.constant 0 : index
    %8 = vector.load %arg7[%c0_6, %c0_7] : memref<8x256xf32, #tpu.memory_space<vmem>>, vector<8x256xf32>
    tpu.vector_store %arg7[%c0_6, %c0_7], %7 {strides = array<i32>} : memref<8x256xf32, #tpu.memory_space<vmem>>, vector<8x256xf32>,
    %c0_i32_8 = arith.constant 0 : i32
    %9 = arith.cmpi eq, %arg1, %c0_i32_8 : i32
    %10 = arith.extui %9 : i1 to i32
    %c0_i32_9 = arith.constant 0 : i32
    %11 = arith.cmpi ne, %10, %c0_i32_9 : i32
    scf.if %11 {
      %c0_10 = arith.constant 0 : index
      %c0_11 = arith.constant 0 : index
      %12 = vector.load %arg7[%c0_10, %c0_11] : memref<8x256xf32, #tpu.memory_space<vmem>>, vector<8x256xf32>
      %cst_12 = arith.constant dense<0.000000e+00> : vector<256xf32>
      %13 = vector.multi_reduction <add>, %12, %cst_12 [0] : vector<8x256xf32> to vector<256xf32>
      %14 = vector.shape_cast %13 : vector<256xf32> to vector<1x256xf32>
      %15 = arith.mulf %12, %12 : vector<8x256xf32>
      %cst_13 = arith.constant dense<0.000000e+00> : vector<256xf32>
      %16 = vector.multi_reduction <add>, %15, %cst_13 [0] : vector<8x256xf32> to vector<256xf32>
      %17 = vector.shape_cast %16 : vector<256xf32> to vector<1x256xf32>
      %cst_14 = arith.constant 1.250000e-01 : f32
      %18 = vector.broadcast %cst_14 : f32 to vector<1x256xf32>
      %19 = arith.mulf %14, %18 : vector<1x256xf32>
      %cst_15 = arith.constant 1.250000e-01 : f32
      %20 = vector.broadcast %cst_15 : f32 to vector<1x256xf32>
      %21 = arith.mulf %17, %20 : vector<1x256xf32>
      %22 = arith.mulf %19, %19 : vector<1x256xf32>
      %23 = arith.subf %21, %22 : vector<1x256xf32>
      %cst_16 = arith.constant 0.000000e+00 : f32
      %24 = vector.broadcast %cst_16 : f32 to vector<1x256xf32>
      %25 = arith.maximumf %23, %24 : vector<1x256xf32>
      %c0_17 = arith.constant 0 : index
      %c0_18 = arith.constant 0 : index
      %26 = vector.load %arg4[%c0_17, %c0_18] : memref<1x256xf32, #tpu.memory_space<vmem>>, vector<1x256xf32>
      %cst_19 = arith.constant 9.99999974E-6 : f32
      %27 = vector.broadcast %cst_19 : f32 to vector<1x256xf32>
      %28 = arith.addf %25, %27 : vector<1x256xf32>
      %29 = math.rsqrt %28 : vector<1x256xf32>
      %30 = arith.mulf %26, %29 : vector<1x256xf32>
      %c0_20 = arith.constant 0 : index
      %c0_21 = arith.constant 0 : index
      %31 = vector.load %arg5[%c0_20, %c0_21] : memref<1x256xf32, #tpu.memory_space<vmem>>, vector<1x256xf32>
      %32 = arith.mulf %19, %30 : vector<1x256xf32>
      %33 = arith.subf %31, %32 : vector<1x256xf32>
      %34 = vector.broadcast %30 : vector<1x256xf32> to vector<8x256xf32>
      %35 = arith.mulf %12, %34 : vector<8x256xf32>
      %36 = vector.broadcast %33 : vector<1x256xf32> to vector<8x256xf32>
      %37 = arith.addf %35, %36 : vector<8x256xf32>
      %cst_22 = arith.constant 0.000000e+00 : f32
      %38 = vector.broadcast %cst_22 : f32 to vector<8x256xf32>
      %39 = arith.maximumf %37, %38 : vector<8x256xf32>
      %c0_23 = arith.constant 0 : index
      %c0_24 = arith.constant 0 : index
      %40 = vector.load %arg6[%c0_23, %c0_24] : memref<8x256xf32, #tpu.memory_space<vmem>>, vector<8x256xf32>
      tpu.vector_store %arg6[%c0_23, %c0_24], %39 {strides = array<i32>} : memref<8x256xf32, #tpu.memory_space<vmem>>, vector<8x256xf32>,
    } else {
    }
    return
  }
  func.func @transform_0(%arg0: i32, %arg1: i32) -> (i32, i32) {
    %c0_i32 = arith.constant 0 : i32
    %c0_i32_0 = arith.constant 0 : i32
    return %c0_i32, %arg1 : i32, i32
  }
  func.func @transform_1(%arg0: i32, %arg1: i32) -> (i32, i32) {
    %c0_i32 = arith.constant 0 : i32
    return %arg0, %arg1 : i32, i32
  }
  func.func @transform_2(%arg0: i32, %arg1: i32) -> (i32, i32) {
    %c0_i32 = arith.constant 0 : i32
    %c0_i32_0 = arith.constant 0 : i32
    return %c0_i32, %arg0 : i32, i32
  }
  func.func @transform_3(%arg0: i32, %arg1: i32) -> (i32, i32) {
    %c0_i32 = arith.constant 0 : i32
    %c0_i32_0 = arith.constant 0 : i32
    return %c0_i32, %arg0 : i32, i32
  }
  func.func @transform_4(%arg0: i32, %arg1: i32) -> (i32, i32) {
    %c0_i32 = arith.constant 0 : i32
    %c0_i32_0 = arith.constant 0 : i32
    return %c0_i32, %arg0 : i32, i32
  }
}

module attributes {stable_mosaic.version = 11 : i64} {
  func.func @linear_block_kernel(%arg0: i32, %arg1: i32, %arg2: memref<8x256xf32, #tpu.memory_space<vmem>>, %arg3: memref<256x256xf32, #tpu.memory_space<vmem>>, %arg4: memref<1x256xf32, #tpu.memory_space<vmem>>, %arg5: memref<1x256xf32, #tpu.memory_space<vmem>>, %arg6: memref<8x256xf32, #tpu.memory_space<vmem>>, %arg7: memref<8x256xf32, #tpu.memory_space<vmem>>) attributes {dimension_semantics = [#tpu.dimension_semantics<parallel>, #tpu.dimension_semantics<arbitrary>], iteration_bounds = array<i64: 1, 1>, scalar_prefetch = 0 : i64, scratch_operands = 1 : i64, tpu.core_type = #tpu.core_type<tc>, window_params = [{transform_indices = @transform_0, window_bounds = array<i64: 8, 256>}, {transform_indices = @transform_1, window_bounds = array<i64: 256, 256>}, {transform_indices = @transform_2, window_bounds = array<i64: 1, 256>}, {transform_indices = @transform_3, window_bounds = array<i64: 1, 256>}, {transform_indices = @transform_4, window_bounds = array<i64: 8, 256>}]} {
    %c0_i32 = arith.constant 0 : i32
    %0 = arith.cmpi eq, %arg1, %c0_i32 : i32
    %1 = arith.extui %0 : i1 to i32
    %c0_i32_0 = arith.constant 0 : i32
    %2 = arith.cmpi ne, %1, %c0_i32_0 : i32
    scf.if %2 {
      %cst_10 = arith.constant 0.000000e+00 : f32
      %12 = vector.broadcast %cst_10 : f32 to vector<8x256xf32>
      %c0_11 = arith.constant 0 : index
      %c0_12 = arith.constant 0 : index
      %13 = vector.load %arg7[%c0_11, %c0_12] : memref<8x256xf32, #tpu.memory_space<vmem>>, vector<8x256xf32>
      tpu.vector_store %arg7[%c0_11, %c0_12], %12 {strides = array<i32>} : memref<8x256xf32, #tpu.memory_space<vmem>>, vector<8x256xf32>,
    } else {
    }
    %c0 = arith.constant 0 : index
    %c0_1 = arith.constant 0 : index
    %3 = vector.load %arg7[%c0, %c0_1] : memref<8x256xf32, #tpu.memory_space<vmem>>, vector<8x256xf32>
    %c0_2 = arith.constant 0 : index
    %c0_3 = arith.constant 0 : index
    %4 = vector.load %arg2[%c0_2, %c0_3] : memref<8x256xf32, #tpu.memory_space<vmem>>, vector<8x256xf32>
    %c0_4 = arith.constant 0 : index
    %c0_5 = arith.constant 0 : index
    %5 = vector.load %arg3[%c0_4, %c0_5] : memref<256x256xf32, #tpu.memory_space<vmem>>, vector<256x256xf32>
    %cst = arith.constant dense<0.000000e+00> : vector<8x256xf32>
    %6 = tpu.matmul %4, %5, %cst {dimension_numbers = #tpu.dot_dimension_numbers<[1], [1], [0], [0], [0, 0, 1, 0], [], []>} : vector<8x256xf32>, vector<256x256xf32>, vector<8x256xf32> -> vector<8x256xf32>
    %7 = arith.addf %3, %6 : vector<8x256xf32>
    %c0_6 = arith.constant 0 : index
    %c0_7 = arith.constant 0 : index
    %8 = vector.load %arg7[%c0_6, %c0_7] : memref<8x256xf32, #tpu.memory_space<vmem>>, vector<8x256xf32>
    tpu.vector_store %arg7[%c0_6, %c0_7], %7 {strides = array<i32>} : memref<8x256xf32, #tpu.memory_space<vmem>>, vector<8x256xf32>,
    %c0_i32_8 = arith.constant 0 : i32
    %9 = arith.cmpi eq, %arg1, %c0_i32_8 : i32
    %10 = arith.extui %9 : i1 to i32
    %c0_i32_9 = arith.constant 0 : i32
    %11 = arith.cmpi ne, %10, %c0_i32_9 : i32
    scf.if %11 {
      %c0_10 = arith.constant 0 : index
      %c0_11 = arith.constant 0 : index
      %12 = vector.load %arg7[%c0_10, %c0_11] : memref<8x256xf32, #tpu.memory_space<vmem>>, vector<8x256xf32>
      %cst_12 = arith.constant dense<0.000000e+00> : vector<256xf32>
      %13 = vector.multi_reduction <add>, %12, %cst_12 [0] : vector<8x256xf32> to vector<256xf32>
      %14 = vector.shape_cast %13 : vector<256xf32> to vector<1x256xf32>
      %15 = arith.mulf %12, %12 : vector<8x256xf32>
      %cst_13 = arith.constant dense<0.000000e+00> : vector<256xf32>
      %16 = vector.multi_reduction <add>, %15, %cst_13 [0] : vector<8x256xf32> to vector<256xf32>
      %17 = vector.shape_cast %16 : vector<256xf32> to vector<1x256xf32>
      %cst_14 = arith.constant 1.250000e-01 : f32
      %18 = vector.broadcast %cst_14 : f32 to vector<1x256xf32>
      %19 = arith.mulf %14, %18 : vector<1x256xf32>
      %cst_15 = arith.constant 1.250000e-01 : f32
      %20 = vector.broadcast %cst_15 : f32 to vector<1x256xf32>
      %21 = arith.mulf %17, %20 : vector<1x256xf32>
      %22 = arith.mulf %19, %19 : vector<1x256xf32>
      %23 = arith.subf %21, %22 : vector<1x256xf32>
      %cst_16 = arith.constant 0.000000e+00 : f32
      %24 = vector.broadcast %cst_16 : f32 to vector<1x256xf32>
      %25 = arith.maximumf %23, %24 : vector<1x256xf32>
      %c0_17 = arith.constant 0 : index
      %c0_18 = arith.constant 0 : index
      %26 = vector.load %arg4[%c0_17, %c0_18] : memref<1x256xf32, #tpu.memory_space<vmem>>, vector<1x256xf32>
      %cst_19 = arith.constant 9.99999974E-6 : f32
      %27 = vector.broadcast %cst_19 : f32 to vector<1x256xf32>
      %28 = arith.addf %25, %27 : vector<1x256xf32>
      %29 = math.rsqrt %28 : vector<1x256xf32>
      %30 = arith.mulf %26, %29 : vector<1x256xf32>
      %c0_20 = arith.constant 0 : index
      %c0_21 = arith.constant 0 : index
      %31 = vector.load %arg5[%c0_20, %c0_21] : memref<1x256xf32, #tpu.memory_space<vmem>>, vector<1x256xf32>
      %32 = arith.mulf %19, %30 : vector<1x256xf32>
      %33 = arith.subf %31, %32 : vector<1x256xf32>
      %34 = vector.broadcast %30 : vector<1x256xf32> to vector<8x256xf32>
      %35 = arith.mulf %12, %34 : vector<8x256xf32>
      %36 = vector.broadcast %33 : vector<1x256xf32> to vector<8x256xf32>
      %37 = arith.addf %35, %36 : vector<8x256xf32>
      %cst_22 = arith.constant 0.000000e+00 : f32
      %38 = vector.broadcast %cst_22 : f32 to vector<8x256xf32>
      %39 = arith.maximumf %37, %38 : vector<8x256xf32>
      %c0_23 = arith.constant 0 : index
      %c0_24 = arith.constant 0 : index
      %40 = vector.load %arg6[%c0_23, %c0_24] : memref<8x256xf32, #tpu.memory_space<vmem>>, vector<8x256xf32>
      tpu.vector_store %arg6[%c0_23, %c0_24], %39 {strides = array<i32>} : memref<8x256xf32, #tpu.memory_space<vmem>>, vector<8x256xf32>,
    } else {
    }
    return
  }
  func.func @transform_0(%arg0: i32, %arg1: i32) -> (i32, i32) {
    %c0_i32 = arith.constant 0 : i32
    %c0_i32_0 = arith.constant 0 : i32
    return %c0_i32, %arg1 : i32, i32
  }
  func.func @transform_1(%arg0: i32, %arg1: i32) -> (i32, i32) {
    %c0_i32 = arith.constant 0 : i32
    return %arg0, %arg1 : i32, i32
  }
  func.func @transform_2(%arg0: i32, %arg1: i32) -> (i32, i32) {
    %c0_i32 = arith.constant 0 : i32
    %c0_i32_0 = arith.constant 0 : i32
    return %c0_i32, %arg0 : i32, i32
  }
  func.func @transform_3(%arg0: i32, %arg1: i32) -> (i32, i32) {
    %c0_i32 = arith.constant 0 : i32
    %c0_i32_0 = arith.constant 0 : i32
    return %c0_i32, %arg0 : i32, i32
  }
  func.func @transform_4(%arg0: i32, %arg1: i32) -> (i32, i32) {
    %c0_i32 = arith.constant 0 : i32
    %c0_i32_0 = arith.constant 0 : i32
    return %c0_i32, %arg0 : i32, i32
  }
}

</mosaic_0001>

<llo_original>
// kernel: tpu_custom_call.1
$region0: #{tpu_custom_call.1}
  #allocation0 [shape = 'u32[]', space=smem, size = 0x4, offset = 0x4, fixed_abs, tag = 'smem constant byte address 0x4 - core index']
  #allocation1 [shape = 'u32[144,128]{1,0:T(1,128)}', space=vmem, size = 0x12000, scoped, tag = 'internal scratch']
  #allocation2 [shape = 'f32[8,256]{1,0:T(8,128)}', space=vmem, size = 0x2000, scoped, tag = 'scratch operand']
  %s0 = inlined_call_operand.hbm [shape: f32[8,256], index: 0, kind: input, shape index: {}]
  %s1 = inlined_call_operand.hbm [shape: f32[256,256], index: 1, kind: input, shape index: {}]
  %s2 = inlined_call_operand.vmem [shape: f32[1,256], index: 2, kind: input, shape index: {}]
  %s3 = inlined_call_operand.vmem [shape: f32[1,256], index: 3, kind: input, shape index: {}]
  %s4 = inlined_call_operand.hbm [shape: f32[8,256], index: 4, kind: output, shape index: {}]
  %s5 = sld [smem:[#allocation0]]
  $region42: #{tpu_custom_call.1} parent=0
    _
  %s7 = ssub.s32 1, %s5
  %s8 = scalar_select 0, %s7, %s5
  $region1: #{tpu_custom_call.1} parent=0
    #allocation3 [shape = 'u8[8192]{0}', space=vmem, size = 0x2000, scoped, tag = 'input window, operand 0, single buffered']
    #allocation4 [shape = 's32[1]{0}', space=sflag, size = 0x4, scoped, tag = 'scoped memory for tpu_custom_call.1']
    #allocation5 [shape = 's32[1]{0}', space=sflag, size = 0x4, scoped, tag = 'scoped memory for tpu_custom_call.1']
    #allocation6 [shape = 'u8[262144]{0}', space=vmem, size = 0x40000, scoped, tag = 'input window, operand 1, single buffered']
    #allocation7 [shape = 's32[1]{0}', space=sflag, size = 0x4, scoped, tag = 'scoped memory for tpu_custom_call.1']
    #allocation8 [shape = 'u8[8192]{0}', space=vmem, size = 0x2000, scoped, tag = 'output window, operand 0, single buffered']
    %9 = vsyncpa [#allocation4], 0
    %10 = vsyncpa [#allocation7], 0
    %11 = vsyncpa [#allocation5], 0
    // Predicated region
    $region2: #{tpu_custom_call.1} parent=1 // pred_check
      _
    $region3: #{tpu_custom_call.1} parent=1 // pred_check_branch
      %13 = sbr.rel (0) target = $region5
    $region4: #{tpu_custom_call.1} parent=1 // pred_region
      %s15 = ssub.s32 256, 256
      %16 = vsyncadd [#allocation4], %s15
      %s18 = sshll.u32 [#allocation3], 4
      %s19 = int_to_ptr.vmem [resolvable:$true] %s18
      %21 = dma.hbm_to_vmem [thread:$0]  %s0, 256, %s19, [#allocation4]
    $region5: #{tpu_custom_call.1} parent=1 // pred_fallthru
      _
    // Predicated region
    $region6: #{tpu_custom_call.1} parent=1 // pred_check
      _
    $region7: #{tpu_custom_call.1} parent=1 // pred_check_branch
      %23 = sbr.rel (0) target = $region9
    $region8: #{tpu_custom_call.1} parent=1 // pred_region
      %s25 = ssub.s32 8192, 8192
      %26 = vsyncadd [#allocation7], %s25
      %s27 = sshll.u32 [#allocation6], 4
      %s28 = int_to_ptr.vmem [resolvable:$true] %s27
      %33 = dma.hbm_to_vmem [thread:$0]  %s1, 8192, %s28, [#allocation7], 256, 256, 16
    $region9: #{tpu_custom_call.1} parent=1 // pred_fallthru
      _
    // Predicated region
    $region10: #{tpu_custom_call.1} parent=1 // pred_check
      _
    $region11: #{tpu_custom_call.1} parent=1 // pred_check_branch
      %35 = sbr.rel (0) target = $region13
    $region12: #{tpu_custom_call.1} parent=1 // pred_region
      _
    $region13: #{tpu_custom_call.1} parent=1 // pred_fallthru
      _
    // Predicated region
    $region14: #{tpu_custom_call.1} parent=1 // pred_check
      _
    $region15: #{tpu_custom_call.1} parent=1 // pred_check_branch
      %37 = sbr.rel (0) target = $region17
    $region16: #{tpu_custom_call.1} parent=1 // pred_region
      _
    $region17: #{tpu_custom_call.1} parent=1 // pred_fallthru
      _
    // Predicated region
    $region18: #{tpu_custom_call.1} parent=1 // pred_check
      _
    $region19: #{tpu_custom_call.1} parent=1 // pred_check_branch
      %39 = sbr.rel (0) target = $region21
    $region20: #{tpu_custom_call.1} parent=1 // pred_region
      %40 = dma.done [#allocation4], 256
    $region21: #{tpu_custom_call.1} parent=1 // pred_fallthru
      _
    // Predicated region
    $region22: #{tpu_custom_call.1} parent=1 // pred_check
      _
    $region23: #{tpu_custom_call.1} parent=1 // pred_check_branch
      %42 = sbr.rel (0) target = $region25
    $region24: #{tpu_custom_call.1} parent=1 // pred_region
      %43 = dma.done [#allocation7], 8192
    $region25: #{tpu_custom_call.1} parent=1 // pred_fallthru
      _
    %p44 = scmp.eq.s32.totalorder 0, 0
    // Predicated region
    $region26: #{tpu_custom_call.1} parent=1 // pred_check
      %p45 = pneg %p44
    $region27: #{tpu_custom_call.1} parent=1 // pred_check_branch
      %47 = sbr.rel (%p45) target = $region29
    $region28: #{tpu_custom_call.1} parent=1 // pred_region
      %48 = vst [vmem:[#allocation2] sm:$0xff] 0.0
      %49 = vst [vmem:[#allocation2 + $0x8] sm:$0xff] 0.0
    $region29: #{tpu_custom_call.1} parent=1 // pred_fallthru
      _
    %v50 = vld [vmem:[#allocation2] sm:$0xff]
    %v51 = vld [vmem:[#allocation2 + $0x8] sm:$0xff]
    %v52 = vld [vmem:[#allocation3] sm:$0xff]
    %v53 = vld [vmem:[#allocation3 + $0x8] sm:$0xff]
    %v54 = vld [vmem:[#allocation6] sm:$0xff]
    %v55 = vld [vmem:[#allocation6 + $0x8] sm:$0xff]
    %v56 = vld [vmem:[#allocation6 + $0x10] sm:$0xff]
    %v57 = vld [vmem:[#allocation6 + $0x18] sm:$0xff]
    %v58 = vld [vmem:[#allocation6 + $0x20] sm:$0xff]
    %v59 = vld [vmem:[#allocation6 + $0x28] sm:$0xff]
    %v60 = vld [vmem:[#allocation6 + $0x30] sm:$0xff]
    %v61 = vld [vmem:[#allocation6 + $0x38] sm:$0xff]
    %v62 = vld [vmem:[#allocation6 + $0x40] sm:$0xff]
    %v63 = vld [vmem:[#allocation6 + $0x48] sm:$0xff]
    %v64 = vld [vmem:[#allocation6 + $0x50] sm:$0xff]
    %v65 = vld [vmem:[#allocation6 + $0x58] sm:$0xff]
    %v66 = vld [vmem:[#allocation6 + $0x60] sm:$0xff]
    %v67 = vld [vmem:[#allocation6 + $0x68] sm:$0xff]
    %v68 = vld [vmem:[#allocation6 + $0x70] sm:$0xff]
    %v69 = vld [vmem:[#allocation6 + $0x78] sm:$0xff]
    %v70 = vld [vmem:[#allocation6 + $0x80] sm:$0xff]
    %v71 = vld [vmem:[#allocation6 + $0x88] sm:$0xff]
    %v72 = vld [vmem:[#allocation6 + $0x90] sm:$0xff]
    %v73 = vld [vmem:[#allocation6 + $0x98] sm:$0xff]
    %v74 = vld [vmem:[#allocation6 + $0xa0] sm:$0xff]
    %v75 = vld [vmem:[#allocation6 + $0xa8] sm:$0xff]
    %v76 = vld [vmem:[#allocation6 + $0xb0] sm:$0xff]
    %v77 = vld [vmem:[#allocation6 + $0xb8] sm:$0xff]
    %v78 = vld [vmem:[#allocation6 + $0xc0] sm:$0xff]
    %v79 = vld [vmem:[#allocation6 + $0xc8] sm:$0xff]
    %v80 = vld [vmem:[#allocation6 + $0xd0] sm:$0xff]
    %v81 = vld [vmem:[#allocation6 + $0xd8] sm:$0xff]
    %v82 = vld [vmem:[#allocation6 + $0xe0] sm:$0xff]
    %v83 = vld [vmem:[#allocation6 + $0xe8] sm:$0xff]
    %v84 = vld [vmem:[#allocation6 + $0xf0] sm:$0xff]
    %v85 = vld [vmem:[#allocation6 + $0xf8] sm:$0xff]
    %v86 = vld [vmem:[#allocation6 + $0x100] sm:$0xff]
    %v87 = vld [vmem:[#allocation6 + $0x108] sm:$0xff]
    %v88 = vld [vmem:[#allocation6 + $0x110] sm:$0xff]
    %v89 = vld [vmem:[#allocation6 + $0x118] sm:$0xff]
    %v90 = vld [vmem:[#allocation6 + $0x120] sm:$0xff]
    %v91 = vld [vmem:[#allocation6 + $0x128] sm:$0xff]
    %v92 = vld [vmem:[#allocation6 + $0x130] sm:$0xff]
    %v93 = vld [vmem:[#allocation6 + $0x138] sm:$0xff]
    %v94 = vld [vmem:[#allocation6 + $0x140] sm:$0xff]
    %v95 = vld [vmem:[#allocation6 + $0x148] sm:$0xff]
    %v96 = vld [vmem:[#allocation6 + $0x150] sm:$0xff]
    %v97 = vld [vmem:[#allocation6 + $0x158] sm:$0xff]
    %v98 = vld [vmem:[#allocation6 + $0x160] sm:$0xff]
    %v99 = vld [vmem:[#allocation6 + $0x168] sm:$0xff]
    %v100 = vld [vmem:[#allocation6 + $0x170] sm:$0xff]
    %v101 = vld [vmem:[#allocation6 + $0x178] sm:$0xff]
    %v102 = vld [vmem:[#allocation6 + $0x180] sm:$0xff]
    %v103 = vld [vmem:[#allocation6 + $0x188] sm:$0xff]
    %v104 = vld [vmem:[#allocation6 + $0x190] sm:$0xff]
    %v105 = vld [vmem:[#allocation6 + $0x198] sm:$0xff]
    %v106 = vld [vmem:[#allocation6 + $0x1a0] sm:$0xff]
    %v107 = vld [vmem:[#allocation6 + $0x1a8] sm:$0xff]
    %v108 = vld [vmem:[#allocation6 + $0x1b0] sm:$0xff]
    %v109 = vld [vmem:[#allocation6 + $0x1b8] sm:$0xff]
    %v110 = vld [vmem:[#allocation6 + $0x1c0] sm:$0xff]
    %v111 = vld [vmem:[#allocation6 + $0x1c8] sm:$0xff]
    %v112 = vld [vmem:[#allocation6 + $0x1d0] sm:$0xff]
    %v113 = vld [vmem:[#allocation6 + $0x1d8] sm:$0xff]
    %v114 = vld [vmem:[#allocation6 + $0x1e0] sm:$0xff]
    %v115 = vld [vmem:[#allocation6 + $0x1e8] sm:$0xff]
    %v116 = vld [vmem:[#allocation6 + $0x1f0] sm:$0xff]
    %v117 = vld [vmem:[#allocation6 + $0x1f8] sm:$0xff]
    %118 = vmatprep.subr.mxu0 %v85
    %119 = vmatpush1.xpose.msra.mxu0 %v84
    %120 = vmatprep.subr.mxu0 %v83
    %121 = vmatpush1.xpose.msra.mxu0 %v82
    %122 = vmatprep.subr.mxu0 %v81
    %123 = vmatpush1.xpose.msra.mxu0 %v80
    %124 = vmatprep.subr.mxu0 %v79
    %125 = vmatpush1.xpose.msra.mxu0 %v78
    %126 = vmatprep.subr.mxu0 %v77
    %127 = vmatpush1.xpose.msra.mxu0 %v76
    %128 = vmatprep.subr.mxu0 %v75
    %129 = vmatpush1.xpose.msra.mxu0 %v74
    %130 = vmatprep.subr.mxu0 %v73
    %131 = vmatpush1.xpose.msra.mxu0 %v72
    %132 = vmatprep.subr.mxu0 %v71
    %133 = vmatpush1.xpose.msra.mxu0 %v70
    %134 = vmatprep.subr.mxu0 %v69
    %135 = vmatpush1.xpose.msra.mxu0 %v68
    %136 = vmatprep.subr.mxu0 %v67
    %137 = vmatpush1.xpose.msra.mxu0 %v66
    %138 = vmatprep.subr.mxu0 %v65
    %139 = vmatpush1.xpose.msra.mxu0 %v64
    %140 = vmatprep.subr.mxu0 %v63
    %141 = vmatpush1.xpose.msra.mxu0 %v62
    %142 = vmatprep.subr.mxu0 %v61
    %143 = vmatpush1.xpose.msra.mxu0 %v60
    %144 = vmatprep.subr.mxu0 %v59
    %145 = vmatpush1.xpose.msra.mxu0 %v58
    %146 = vmatprep.subr.mxu0 %v57
    %147 = vmatpush1.xpose.msra.mxu0 %v56
    %148 = vmatprep.subr.mxu0 %v55
    %149 = vmatpush1.xpose.msra.mxu0 %v54
    %150 = vmatprep.subr.mxu0 %v117
    %151 = vmatpush2.xpose.msra.mxu0 %v116
    %152 = vmatprep.subr.mxu0 %v115
    %153 = vmatpush2.xpose.msra.mxu0 %v114
    %154 = vmatprep.subr.mxu0 %v113
    %155 = vmatpush2.xpose.msra.mxu0 %v112
    %156 = vmatprep.subr.mxu0 %v111
    %157 = vmatpush2.xpose.msra.mxu0 %v110
    %158 = vmatprep.subr.mxu0 %v109
    %159 = vmatpush2.xpose.msra.mxu0 %v108
    %160 = vmatprep.subr.mxu0 %v107
    %161 = vmatpush2.xpose.msra.mxu0 %v106
    %162 = vmatprep.subr.mxu0 %v105
    %163 = vmatpush2.xpose.msra.mxu0 %v104
    %164 = vmatprep.subr.mxu0 %v103
    %165 = vmatpush2.xpose.msra.mxu0 %v102
    %166 = vmatprep.subr.mxu0 %v101
    %167 = vmatpush2.xpose.msra.mxu0 %v100
    %168 = vmatprep.subr.mxu0 %v99
    %169 = vmatpush2.xpose.msra.mxu0 %v98
    %170 = vmatprep.subr.mxu0 %v97
    %171 = vmatpush2.xpose.msra.mxu0 %v96
    %172 = vmatprep.subr.mxu0 %v95
    %173 = vmatpush2.xpose.msra.mxu0 %v94
    %174 = vmatprep.subr.mxu0 %v93
    %175 = vmatpush2.xpose.msra.mxu0 %v92
    %176 = vmatprep.subr.mxu0 %v91
    %177 = vmatpush2.xpose.msra.mxu0 %v90
    %178 = vmatprep.subr.mxu0 %v89
    %179 = vmatpush2.xpose.msra.mxu0 %v88
    %180 = vmatprep.subr.mxu0 %v87
    %181 = vmatpush2.xpose.msra.mxu0 %v86
    %182 = vmatprep.mubr.f32.mxu0 %v53
    %183 = vmatmul.mubr.f32.gmra.mxu0 %v52
    %v184 = vpop.f32.mrf.mxu0
    %v185 = vadd.f32 0.0, %v184
    %v186 = vpop.f32.mrf.mxu0
    %v187 = vadd.f32 0.0, %v186
    %188 = vdwg.mxu0
    %v189 = vadd.f32 %v50, %v185
    %v190 = vadd.f32 %v51, %v187
    %191 = vst [vmem:[#allocation2] sm:$0xff] %v189
    %192 = vst [vmem:[#allocation2 + $0x8] sm:$0xff] %v190
    // Predicated region
    $region30: #{tpu_custom_call.1} parent=1 // pred_check
      %p193 = pneg %p44
    $region31: #{tpu_custom_call.1} parent=1 // pred_check_branch
      %195 = sbr.rel (%p193) target = $region33
    $region32: #{tpu_custom_call.1} parent=1 // pred_region
      %v196 = vld [vmem:[#allocation2] sm:$0xff]
      %v197 = vld [vmem:[#allocation2 + $0x8] sm:$0xff]
      %v198 = vrot.slane %v196, 4
      %v199 = vadd.f32 %v196, %v198
      %v200 = vrot.slane %v199, 2
      %v201 = vadd.f32 %v199, %v200
      %v202 = vrot.slane %v201, 1
      %v203 = vadd.f32 %v201, %v202
      %v204 = vrot.slane %v197, 4
      %v205 = vadd.f32 %v197, %v204
      %v206 = vrot.slane %v205, 2
      %v207 = vadd.f32 %v205, %v206
      %v208 = vrot.slane %v207, 1
      %v209 = vadd.f32 %v207, %v208
      %v210 = vmul.f32 %v196, %v196
      %v211 = vmul.f32 %v197, %v197
      %v212 = vrot.slane %v210, 4
      %v213 = vadd.f32 %v210, %v212
      %v214 = vrot.slane %v213, 2
      %v215 = vadd.f32 %v213, %v214
      %v216 = vrot.slane %v215, 1
      %v217 = vadd.f32 %v215, %v216
      %v218 = vrot.slane %v211, 4
      %v219 = vadd.f32 %v211, %v218
      %v220 = vrot.slane %v219, 2
      %v221 = vadd.f32 %v219, %v220
      %v222 = vrot.slane %v221, 1
      %v223 = vadd.f32 %v221, %v222
      %v224 = vmul.f32 %v203, 0.125
      %v225 = vmul.f32 %v209, 0.125
      %v226 = vmul.f32 %v217, 0.125
      %v227 = vmul.f32 %v223, 0.125
      %v228 = vmul.f32 %v224, %v224
      %v229 = vmul.f32 %v225, %v225
      %v230 = vsub.f32 %v226, %v228
      %v231 = vsub.f32 %v227, %v229
      %v232 = vmax.f32 %v230, 0.0
      %v233 = vmax.f32 %v231, 0.0
      %v234 = vld [vmem:[%s2] sm:$0x3]
      %v235 = vadd.f32 %v232, 1e-05
      %v236 = vadd.f32 %v233, 1e-05
      %v237 = vrsqrt.pop %v235
      %v238 = vrsqrt.pop %v236
      %v241 = vcombine.low %v237, %v238
      %v243 = vunpack.c.l.s4 1966171168
      %v244 = vunpack.c.0.s8 %v243
      %v245 = vlaneseq
      %v246 = vshrl.u32 %v245, 7
      %v247 = vsub.s32 %v244, %v246
      %v248 = vrot.slane %v241, %v247
      %v250 = vunpack.c.l.s4 1966171168
      %v251 = vunpack.c.0.s8 %v250
      %v252 = vlaneseq
      %v253 = vshrl.u32 %v252, 7
      %v254 = vsub.s32 %v251, %v253
      %v255 = vrot.slane %v248, %v254
      %v257 = vmul.f32 %v234, %v255
      %v258 = vld [vmem:[%s3] sm:$0x3]
      %v260 = vlaneseq
      %v261 = vshrl.u32 %v260, 7
      %v262 = vsub.s32 0, %v261
      %v263 = vrot.slane %v257, %v262
      %v264 = vlaneseq
      %v265 = vshrl.u32 %v264, 7
      %v266 = vsub.s32 1, %v265
      %v267 = vrot.slane %v257, %v266
      %v270 = vmul.f32 %v224, %v263
      %v271 = vmul.f32 %v225, %v267
      %v274 = vcombine.low %v270, %v271
      %v276 = vunpack.c.l.s4 1966171168
      %v277 = vunpack.c.0.s8 %v276
      %v278 = vlaneseq
      %v279 = vshrl.u32 %v278, 7
      %v280 = vsub.s32 %v277, %v279
      %v281 = vrot.slane %v274, %v280
      %v283 = vunpack.c.l.s4 1966171168
      %v284 = vunpack.c.0.s8 %v283
      %v285 = vlaneseq
      %v286 = vshrl.u32 %v285, 7
      %v287 = vsub.s32 %v284, %v286
      %v288 = vrot.slane %v281, %v287
      %v290 = vsub.f32 %v258, %v288
      %v291 = vmul.f32 %v196, %v263
      %v292 = vmul.f32 %v197, %v267
      %v294 = vlaneseq
      %v295 = vshrl.u32 %v294, 7
      %v296 = vsub.s32 0, %v295
      %v297 = vrot.slane %v290, %v296
      %v298 = vlaneseq
      %v299 = vshrl.u32 %v298, 7
      %v300 = vsub.s32 1, %v299
      %v301 = vrot.slane %v290, %v300
      %v304 = vadd.f32 %v291, %v297
      %v305 = vadd.f32 %v292, %v301
      %v306 = vmax.f32 %v304, 0.0
      %v307 = vmax.f32 %v305, 0.0
      %308 = vst [vmem:[#allocation8] sm:$0xff] %v306
      %309 = vst [vmem:[#allocation8 + $0x8] sm:$0xff] %v307
    $region33: #{tpu_custom_call.1} parent=1 // pred_fallthru
      _
    // Predicated region
    $region34: #{tpu_custom_call.1} parent=1 // pred_check
      _
    $region35: #{tpu_custom_call.1} parent=1 // pred_check_branch
      %311 = sbr.rel (0) target = $region37
    $region36: #{tpu_custom_call.1} parent=1 // pred_region
      %s313 = ssub.s32 256, 256
      %314 = vsyncadd [#allocation5], %s313
      %s316 = sshll.u32 [#allocation8], 4
      %s317 = int_to_ptr.vmem [resolvable:$true] %s316
      %319 = dma.vmem_to_hbm [thread:$0]  %s317, 256, %s4, [#allocation5]
    $region37: #{tpu_custom_call.1} parent=1 // pred_fallthru
      _
    // Predicated region
    $region38: #{tpu_custom_call.1} parent=1 // pred_check
      _
    $region39: #{tpu_custom_call.1} parent=1 // pred_check_branch
      %321 = sbr.rel (0) target = $region41
    $region40: #{tpu_custom_call.1} parent=1 // pred_region
      %322 = dma.done [#allocation5], 256
    $region41: #{tpu_custom_call.1} parent=1 // pred_fallthru
      _
    %323 = vsyncpa [#allocation4], 1
    %324 = vsyncpa [#allocation7], 1
    %325 = vsyncpa [#allocation5], 1

// kernel: tpu_custom_call.1
$region0: #{tpu_custom_call.1}
  #allocation0 [shape = 'u32[]', space=smem, size = 0x4, offset = 0x4, fixed_abs, tag = 'smem constant byte address 0x4 - core index']
  #allocation1 [shape = 'u32[144,128]{1,0:T(1,128)}', space=vmem, size = 0x12000, scoped, tag = 'internal scratch']
  #allocation2 [shape = 'f32[8,256]{1,0:T(8,128)}', space=vmem, size = 0x2000, scoped, tag = 'scratch operand']
  %s0 = inlined_call_operand.hbm [shape: f32[8,256], index: 0, kind: input, shape index: {}]
  %s1 = inlined_call_operand.hbm [shape: f32[256,256], index: 1, kind: input, shape index: {}]
  %s2 = inlined_call_operand.vmem [shape: f32[1,256], index: 2, kind: input, shape index: {}]
  %s3 = inlined_call_operand.vmem [shape: f32[1,256], index: 3, kind: input, shape index: {}]
  %s4 = inlined_call_operand.hbm [shape: f32[8,256], index: 4, kind: output, shape index: {}]
  %s5 = sld [smem:[#allocation0]]
  $region42: #{tpu_custom_call.1} parent=0
    _
  %s7 = ssub.s32 1, %s5
  %s8 = scalar_select 0, %s7, %s5
  $region1: #{tpu_custom_call.1} parent=0
    #allocation3 [shape = 'u8[8192]{0}', space=vmem, size = 0x2000, scoped, tag = 'input window, operand 0, single buffered']
    #allocation4 [shape = 's32[1]{0}', space=sflag, size = 0x4, scoped, tag = 'scoped memory for tpu_custom_call.1']
    #allocation5 [shape = 's32[1]{0}', space=sflag, size = 0x4, scoped, tag = 'scoped memory for tpu_custom_call.1']
    #allocation6 [shape = 'u8[262144]{0}', space=vmem, size = 0x40000, scoped, tag = 'input window, operand 1, single buffered']
    #allocation7 [shape = 's32[1]{0}', space=sflag, size = 0x4, scoped, tag = 'scoped memory for tpu_custom_call.1']
    #allocation8 [shape = 'u8[8192]{0}', space=vmem, size = 0x2000, scoped, tag = 'output window, operand 0, single buffered']
    %9 = vsyncpa [#allocation4], 0
    %10 = vsyncpa [#allocation7], 0
    %11 = vsyncpa [#allocation5], 0
    // Predicated region
    $region2: #{tpu_custom_call.1} parent=1 // pred_check
      _
    $region3: #{tpu_custom_call.1} parent=1 // pred_check_branch
      %13 = sbr.rel (0) target = $region5
    $region4: #{tpu_custom_call.1} parent=1 // pred_region
      %s15 = ssub.s32 256, 256
      %16 = vsyncadd [#allocation4], %s15
      %s18 = sshll.u32 [#allocation3], 4
      %s19 = int_to_ptr.vmem [resolvable:$true] %s18
      %21 = dma.hbm_to_vmem [thread:$0]  %s0, 256, %s19, [#allocation4]
    $region5: #{tpu_custom_call.1} parent=1 // pred_fallthru
      _
    // Predicated region
    $region6: #{tpu_custom_call.1} parent=1 // pred_check
      _
    $region7: #{tpu_custom_call.1} parent=1 // pred_check_branch
      %23 = sbr.rel (0) target = $region9
    $region8: #{tpu_custom_call.1} parent=1 // pred_region
      %s25 = ssub.s32 8192, 8192
      %26 = vsyncadd [#allocation7], %s25
      %s27 = sshll.u32 [#allocation6], 4
      %s28 = int_to_ptr.vmem [resolvable:$true] %s27
      %33 = dma.hbm_to_vmem [thread:$0]  %s1, 8192, %s28, [#allocation7], 256, 256, 16
    $region9: #{tpu_custom_call.1} parent=1 // pred_fallthru
      _
    // Predicated region
    $region10: #{tpu_custom_call.1} parent=1 // pred_check
      _
    $region11: #{tpu_custom_call.1} parent=1 // pred_check_branch
      %35 = sbr.rel (0) target = $region13
    $region12: #{tpu_custom_call.1} parent=1 // pred_region
      _
    $region13: #{tpu_custom_call.1} parent=1 // pred_fallthru
      _
    // Predicated region
    $region14: #{tpu_custom_call.1} parent=1 // pred_check
      _
    $region15: #{tpu_custom_call.1} parent=1 // pred_check_branch
      %37 = sbr.rel (0) target = $region17
    $region16: #{tpu_custom_call.1} parent=1 // pred_region
      _
    $region17: #{tpu_custom_call.1} parent=1 // pred_fallthru
      _
    // Predicated region
    $region18: #{tpu_custom_call.1} parent=1 // pred_check
      _
    $region19: #{tpu_custom_call.1} parent=1 // pred_check_branch
      %39 = sbr.rel (0) target = $region21
    $region20: #{tpu_custom_call.1} parent=1 // pred_region
      %40 = dma.done [#allocation4], 256
    $region21: #{tpu_custom_call.1} parent=1 // pred_fallthru
      _
    // Predicated region
    $region22: #{tpu_custom_call.1} parent=1 // pred_check
      _
    $region23: #{tpu_custom_call.1} parent=1 // pred_check_branch
      %42 = sbr.rel (0) target = $region25
    $region24: #{tpu_custom_call.1} parent=1 // pred_region
      %43 = dma.done [#allocation7], 8192
    $region25: #{tpu_custom_call.1} parent=1 // pred_fallthru
      _
    %p44 = scmp.eq.s32.totalorder 0, 0
    // Predicated region
    $region26: #{tpu_custom_call.1} parent=1 // pred_check
      %p45 = pneg %p44
    $region27: #{tpu_custom_call.1} parent=1 // pred_check_branch
      %47 = sbr.rel (%p45) target = $region29
    $region28: #{tpu_custom_call.1} parent=1 // pred_region
      %48 = vst [vmem:[#allocation2] sm:$0xff] 0.0
      %49 = vst [vmem:[#allocation2 + $0x8] sm:$0xff] 0.0
    $region29: #{tpu_custom_call.1} parent=1 // pred_fallthru
      _
    %v50 = vld [vmem:[#allocation2] sm:$0xff]
    %v51 = vld [vmem:[#allocation2 + $0x8] sm:$0xff]
    %v52 = vld [vmem:[#allocation3] sm:$0xff]
    %v53 = vld [vmem:[#allocation3 + $0x8] sm:$0xff]
    %v54 = vld [vmem:[#allocation6] sm:$0xff]
    %v55 = vld [vmem:[#allocation6 + $0x8] sm:$0xff]
    %v56 = vld [vmem:[#allocation6 + $0x10] sm:$0xff]
    %v57 = vld [vmem:[#allocation6 + $0x18] sm:$0xff]
    %v58 = vld [vmem:[#allocation6 + $0x20] sm:$0xff]
    %v59 = vld [vmem:[#allocation6 + $0x28] sm:$0xff]
    %v60 = vld [vmem:[#allocation6 + $0x30] sm:$0xff]
    %v61 = vld [vmem:[#allocation6 + $0x38] sm:$0xff]
    %v62 = vld [vmem:[#allocation6 + $0x40] sm:$0xff]
    %v63 = vld [vmem:[#allocation6 + $0x48] sm:$0xff]
    %v64 = vld [vmem:[#allocation6 + $0x50] sm:$0xff]
    %v65 = vld [vmem:[#allocation6 + $0x58] sm:$0xff]
    %v66 = vld [vmem:[#allocation6 + $0x60] sm:$0xff]
    %v67 = vld [vmem:[#allocation6 + $0x68] sm:$0xff]
    %v68 = vld [vmem:[#allocation6 + $0x70] sm:$0xff]
    %v69 = vld [vmem:[#allocation6 + $0x78] sm:$0xff]
    %v70 = vld [vmem:[#allocation6 + $0x80] sm:$0xff]
    %v71 = vld [vmem:[#allocation6 + $0x88] sm:$0xff]
    %v72 = vld [vmem:[#allocation6 + $0x90] sm:$0xff]
    %v73 = vld [vmem:[#allocation6 + $0x98] sm:$0xff]
    %v74 = vld [vmem:[#allocation6 + $0xa0] sm:$0xff]
    %v75 = vld [vmem:[#allocation6 + $0xa8] sm:$0xff]
    %v76 = vld [vmem:[#allocation6 + $0xb0] sm:$0xff]
    %v77 = vld [vmem:[#allocation6 + $0xb8] sm:$0xff]
    %v78 = vld [vmem:[#allocation6 + $0xc0] sm:$0xff]
    %v79 = vld [vmem:[#allocation6 + $0xc8] sm:$0xff]
    %v80 = vld [vmem:[#allocation6 + $0xd0] sm:$0xff]
    %v81 = vld [vmem:[#allocation6 + $0xd8] sm:$0xff]
    %v82 = vld [vmem:[#allocation6 + $0xe0] sm:$0xff]
    %v83 = vld [vmem:[#allocation6 + $0xe8] sm:$0xff]
    %v84 = vld [vmem:[#allocation6 + $0xf0] sm:$0xff]
    %v85 = vld [vmem:[#allocation6 + $0xf8] sm:$0xff]
    %v86 = vld [vmem:[#allocation6 + $0x100] sm:$0xff]
    %v87 = vld [vmem:[#allocation6 + $0x108] sm:$0xff]
    %v88 = vld [vmem:[#allocation6 + $0x110] sm:$0xff]
    %v89 = vld [vmem:[#allocation6 + $0x118] sm:$0xff]
    %v90 = vld [vmem:[#allocation6 + $0x120] sm:$0xff]
    %v91 = vld [vmem:[#allocation6 + $0x128] sm:$0xff]
    %v92 = vld [vmem:[#allocation6 + $0x130] sm:$0xff]
    %v93 = vld [vmem:[#allocation6 + $0x138] sm:$0xff]
    %v94 = vld [vmem:[#allocation6 + $0x140] sm:$0xff]
    %v95 = vld [vmem:[#allocation6 + $0x148] sm:$0xff]
    %v96 = vld [vmem:[#allocation6 + $0x150] sm:$0xff]
    %v97 = vld [vmem:[#allocation6 + $0x158] sm:$0xff]
    %v98 = vld [vmem:[#allocation6 + $0x160] sm:$0xff]
    %v99 = vld [vmem:[#allocation6 + $0x168] sm:$0xff]
    %v100 = vld [vmem:[#allocation6 + $0x170] sm:$0xff]
    %v101 = vld [vmem:[#allocation6 + $0x178] sm:$0xff]
    %v102 = vld [vmem:[#allocation6 + $0x180] sm:$0xff]
    %v103 = vld [vmem:[#allocation6 + $0x188] sm:$0xff]
    %v104 = vld [vmem:[#allocation6 + $0x190] sm:$0xff]
    %v105 = vld [vmem:[#allocation6 + $0x198] sm:$0xff]
    %v106 = vld [vmem:[#allocation6 + $0x1a0] sm:$0xff]
    %v107 = vld [vmem:[#allocation6 + $0x1a8] sm:$0xff]
    %v108 = vld [vmem:[#allocation6 + $0x1b0] sm:$0xff]
    %v109 = vld [vmem:[#allocation6 + $0x1b8] sm:$0xff]
    %v110 = vld [vmem:[#allocation6 + $0x1c0] sm:$0xff]
    %v111 = vld [vmem:[#allocation6 + $0x1c8] sm:$0xff]
    %v112 = vld [vmem:[#allocation6 + $0x1d0] sm:$0xff]
    %v113 = vld [vmem:[#allocation6 + $0x1d8] sm:$0xff]
    %v114 = vld [vmem:[#allocation6 + $0x1e0] sm:$0xff]
    %v115 = vld [vmem:[#allocation6 + $0x1e8] sm:$0xff]
    %v116 = vld [vmem:[#allocation6 + $0x1f0] sm:$0xff]
    %v117 = vld [vmem:[#allocation6 + $0x1f8] sm:$0xff]
    %118 = vmatprep.subr.mxu0 %v85
    %119 = vmatpush1.xpose.msra.mxu0 %v84
    %120 = vmatprep.subr.mxu0 %v83
    %121 = vmatpush1.xpose.msra.mxu0 %v82
    %122 = vmatprep.subr.mxu0 %v81
    %123 = vmatpush1.xpose.msra.mxu0 %v80
    %124 = vmatprep.subr.mxu0 %v79
    %125 = vmatpush1.xpose.msra.mxu0 %v78
    %126 = vmatprep.subr.mxu0 %v77
    %127 = vmatpush1.xpose.msra.mxu0 %v76
    %128 = vmatprep.subr.mxu0 %v75
    %129 = vmatpush1.xpose.msra.mxu0 %v74
    %130 = vmatprep.subr.mxu0 %v73
    %131 = vmatpush1.xpose.msra.mxu0 %v72
    %132 = vmatprep.subr.mxu0 %v71
    %133 = vmatpush1.xpose.msra.mxu0 %v70
    %134 = vmatprep.subr.mxu0 %v69
    %135 = vmatpush1.xpose.msra.mxu0 %v68
    %136 = vmatprep.subr.mxu0 %v67
    %137 = vmatpush1.xpose.msra.mxu0 %v66
    %138 = vmatprep.subr.mxu0 %v65
    %139 = vmatpush1.xpose.msra.mxu0 %v64
    %140 = vmatprep.subr.mxu0 %v63
    %141 = vmatpush1.xpose.msra.mxu0 %v62
    %142 = vmatprep.subr.mxu0 %v61
    %143 = vmatpush1.xpose.msra.mxu0 %v60
    %144 = vmatprep.subr.mxu0 %v59
    %145 = vmatpush1.xpose.msra.mxu0 %v58
    %146 = vmatprep.subr.mxu0 %v57
    %147 = vmatpush1.xpose.msra.mxu0 %v56
    %148 = vmatprep.subr.mxu0 %v55
    %149 = vmatpush1.xpose.msra.mxu0 %v54
    %150 = vmatprep.subr.mxu0 %v117
    %151 = vmatpush2.xpose.msra.mxu0 %v116
    %152 = vmatprep.subr.mxu0 %v115
    %153 = vmatpush2.xpose.msra.mxu0 %v114
    %154 = vmatprep.subr.mxu0 %v113
    %155 = vmatpush2.xpose.msra.mxu0 %v112
    %156 = vmatprep.subr.mxu0 %v111
    %157 = vmatpush2.xpose.msra.mxu0 %v110
    %158 = vmatprep.subr.mxu0 %v109
    %159 = vmatpush2.xpose.msra.mxu0 %v108
    %160 = vmatprep.subr.mxu0 %v107
    %161 = vmatpush2.xpose.msra.mxu0 %v106
    %162 = vmatprep.subr.mxu0 %v105
    %163 = vmatpush2.xpose.msra.mxu0 %v104
    %164 = vmatprep.subr.mxu0 %v103
    %165 = vmatpush2.xpose.msra.mxu0 %v102
    %166 = vmatprep.subr.mxu0 %v101
    %167 = vmatpush2.xpose.msra.mxu0 %v100
    %168 = vmatprep.subr.mxu0 %v99
    %169 = vmatpush2.xpose.msra.mxu0 %v98
    %170 = vmatprep.subr.mxu0 %v97
    %171 = vmatpush2.xpose.msra.mxu0 %v96
    %172 = vmatprep.subr.mxu0 %v95
    %173 = vmatpush2.xpose.msra.mxu0 %v94
    %174 = vmatprep.subr.mxu0 %v93
    %175 = vmatpush2.xpose.msra.mxu0 %v92
    %176 = vmatprep.subr.mxu0 %v91
    %177 = vmatpush2.xpose.msra.mxu0 %v90
    %178 = vmatprep.subr.mxu0 %v89
    %179 = vmatpush2.xpose.msra.mxu0 %v88
    %180 = vmatprep.subr.mxu0 %v87
    %181 = vmatpush2.xpose.msra.mxu0 %v86
    %182 = vmatprep.mubr.f32.mxu0 %v53
    %183 = vmatmul.mubr.f32.gmra.mxu0 %v52
    %v184 = vpop.f32.mrf.mxu0
    %v185 = vadd.f32 0.0, %v184
    %v186 = vpop.f32.mrf.mxu0
    %v187 = vadd.f32 0.0, %v186
    %188 = vdwg.mxu0
    %v189 = vadd.f32 %v50, %v185
    %v190 = vadd.f32 %v51, %v187
    %191 = vst [vmem:[#allocation2] sm:$0xff] %v189
    %192 = vst [vmem:[#allocation2 + $0x8] sm:$0xff] %v190
    // Predicated region
    $region30: #{tpu_custom_call.1} parent=1 // pred_check
      %p193 = pneg %p44
    $region31: #{tpu_custom_call.1} parent=1 // pred_check_branch
      %195 = sbr.rel (%p193) target = $region33
    $region32: #{tpu_custom_call.1} parent=1 // pred_region
      %v196 = vld [vmem:[#allocation2] sm:$0xff]
      %v197 = vld [vmem:[#allocation2 + $0x8] sm:$0xff]
      %v198 = vrot.slane %v196, 4
      %v199 = vadd.f32 %v196, %v198
      %v200 = vrot.slane %v199, 2
      %v201 = vadd.f32 %v199, %v200
      %v202 = vrot.slane %v201, 1
      %v203 = vadd.f32 %v201, %v202
      %v204 = vrot.slane %v197, 4
      %v205 = vadd.f32 %v197, %v204
      %v206 = vrot.slane %v205, 2
      %v207 = vadd.f32 %v205, %v206
      %v208 = vrot.slane %v207, 1
      %v209 = vadd.f32 %v207, %v208
      %v210 = vmul.f32 %v196, %v196
      %v211 = vmul.f32 %v197, %v197
      %v212 = vrot.slane %v210, 4
      %v213 = vadd.f32 %v210, %v212
      %v214 = vrot.slane %v213, 2
      %v215 = vadd.f32 %v213, %v214
      %v216 = vrot.slane %v215, 1
      %v217 = vadd.f32 %v215, %v216
      %v218 = vrot.slane %v211, 4
      %v219 = vadd.f32 %v211, %v218
      %v220 = vrot.slane %v219, 2
      %v221 = vadd.f32 %v219, %v220
      %v222 = vrot.slane %v221, 1
      %v223 = vadd.f32 %v221, %v222
      %v224 = vmul.f32 %v203, 0.125
      %v225 = vmul.f32 %v209, 0.125
      %v226 = vmul.f32 %v217, 0.125
      %v227 = vmul.f32 %v223, 0.125
      %v228 = vmul.f32 %v224, %v224
      %v229 = vmul.f32 %v225, %v225
      %v230 = vsub.f32 %v226, %v228
      %v231 = vsub.f32 %v227, %v229
      %v232 = vmax.f32 %v230, 0.0
      %v233 = vmax.f32 %v231, 0.0
      %v234 = vld [vmem:[%s2] sm:$0x3]
      %v235 = vadd.f32 %v232, 1e-05
      %v236 = vadd.f32 %v233, 1e-05
      %v237 = vrsqrt.pop %v235
      %v238 = vrsqrt.pop %v236
      %v241 = vcombine.low %v237, %v238
      %v243 = vunpack.c.l.s4 1966171168
      %v244 = vunpack.c.0.s8 %v243
      %v245 = vlaneseq
      %v246 = vshrl.u32 %v245, 7
      %v247 = vsub.s32 %v244, %v246
      %v248 = vrot.slane %v241, %v247
      %v250 = vunpack.c.l.s4 1966171168
      %v251 = vunpack.c.0.s8 %v250
      %v252 = vlaneseq
      %v253 = vshrl.u32 %v252, 7
      %v254 = vsub.s32 %v251, %v253
      %v255 = vrot.slane %v248, %v254
      %v257 = vmul.f32 %v234, %v255
      %v258 = vld [vmem:[%s3] sm:$0x3]
      %v260 = vlaneseq
      %v261 = vshrl.u32 %v260, 7
      %v262 = vsub.s32 0, %v261
      %v263 = vrot.slane %v257, %v262
      %v264 = vlaneseq
      %v265 = vshrl.u32 %v264, 7
      %v266 = vsub.s32 1, %v265
      %v267 = vrot.slane %v257, %v266
      %v270 = vmul.f32 %v224, %v263
      %v271 = vmul.f32 %v225, %v267
      %v274 = vcombine.low %v270, %v271
      %v276 = vunpack.c.l.s4 1966171168
      %v277 = vunpack.c.0.s8 %v276
      %v278 = vlaneseq
      %v279 = vshrl.u32 %v278, 7
      %v280 = vsub.s32 %v277, %v279
      %v281 = vrot.slane %v274, %v280
      %v283 = vunpack.c.l.s4 1966171168
      %v284 = vunpack.c.0.s8 %v283
      %v285 = vlaneseq
      %v286 = vshrl.u32 %v285, 7
      %v287 = vsub.s32 %v284, %v286
      %v288 = vrot.slane %v281, %v287
      %v290 = vsub.f32 %v258, %v288
      %v291 = vmul.f32 %v196, %v263
      %v292 = vmul.f32 %v197, %v267
      %v294 = vlaneseq
      %v295 = vshrl.u32 %v294, 7
      %v296 = vsub.s32 0, %v295
      %v297 = vrot.slane %v290, %v296
      %v298 = vlaneseq
      %v299 = vshrl.u32 %v298, 7
      %v300 = vsub.s32 1, %v299
      %v301 = vrot.slane %v290, %v300
      %v304 = vadd.f32 %v291, %v297
      %v305 = vadd.f32 %v292, %v301
      %v306 = vmax.f32 %v304, 0.0
      %v307 = vmax.f32 %v305, 0.0
      %308 = vst [vmem:[#allocation8] sm:$0xff] %v306
      %309 = vst [vmem:[#allocation8 + $0x8] sm:$0xff] %v307
    $region33: #{tpu_custom_call.1} parent=1 // pred_fallthru
      _
    // Predicated region
    $region34: #{tpu_custom_call.1} parent=1 // pred_check
      _
    $region35: #{tpu_custom_call.1} parent=1 // pred_check_branch
      %311 = sbr.rel (0) target = $region37
    $region36: #{tpu_custom_call.1} parent=1 // pred_region
      %s313 = ssub.s32 256, 256
      %314 = vsyncadd [#allocation5], %s313
      %s316 = sshll.u32 [#allocation8], 4
      %s317 = int_to_ptr.vmem [resolvable:$true] %s316
      %319 = dma.vmem_to_hbm [thread:$0]  %s317, 256, %s4, [#allocation5]
    $region37: #{tpu_custom_call.1} parent=1 // pred_fallthru
      _
    // Predicated region
    $region38: #{tpu_custom_call.1} parent=1 // pred_check
      _
    $region39: #{tpu_custom_call.1} parent=1 // pred_check_branch
      %321 = sbr.rel (0) target = $region41
    $region40: #{tpu_custom_call.1} parent=1 // pred_region
      %322 = dma.done [#allocation5], 256
    $region41: #{tpu_custom_call.1} parent=1 // pred_fallthru
      _
    %323 = vsyncpa [#allocation4], 1
    %324 = vsyncpa [#allocation7], 1
    %325 = vsyncpa [#allocation5], 1

</llo_original>
